<compile_context>
chip_gen: v7x
topology: tpu7x:2x2x1
jax: 0.10.0
libtpu: 0.0.40
codegen_flags: <defaults>
</compile_context>

<pallas_src>
import jax
import jax.numpy as jnp
from jax.experimental import pallas as pl
from jax.experimental.pallas import tpu as pltpu

LN_EPS = 1e-5


def _patch_merge_kernel(x_ref, we_ref, wo_ref, cs_ref, b_ref, o_ref):
    """One grid step: `tr` output row-groups (= tr*Wop output positions).

    x_ref : (tr, 2, Wop, 2C)  even/odd image-row slabs, one contiguous DMA.
    we_ref: (2C, 2C)  LN-gamma-folded weight rows for the even slab [x0 | x2].
    wo_ref: (2C, 2C)  LN-gamma-folded weight rows for the odd  slab [x1 | x3].
    cs_ref: (1, 2C)   column sums of the folded weight (for the -mean term).
    b_ref : (1, 2C)   LN beta folded through the Linear.
    o_ref : (tr, Wop, 2C)
    """
    tr, _, wop, c2 = x_ref.shape
    rows = tr * wop
    inv_c4 = 1.0 / (2 * c2)

    # Parity select on a leading dim (free) + sublane-aligned flatten
    # (Wop % 8 == 0 by construction, so no relayout copy).
    xe = x_ref[:, 0, :, :].reshape(rows, c2)   # [x0 | x2]
    xo = x_ref[:, 1, :, :].reshape(rows, c2)   # [x1 | x3]

    # LayerNorm statistics over the 4C group, in f32 (single pass).
    xe_f = xe.astype(jnp.float32)
    xo_f = xo.astype(jnp.float32)
    s1 = jnp.sum(xe_f, -1, keepdims=True) + jnp.sum(xo_f, -1, keepdims=True)
    s2 = (jnp.sum(xe_f * xe_f, -1, keepdims=True)
          + jnp.sum(xo_f * xo_f, -1, keepdims=True))
    mean = s1 * inv_c4
    var = jnp.maximum(s2 * inv_c4 - mean * mean, 0.0)
    inv = jax.lax.rsqrt(var + LN_EPS)

    # Normalization hoisted out of the matmul:
    #   y = inv * (x @ W' - mean * colsum(W')) + beta @ W.T
    # For bf16 models xe/xo go to the MXU as-is (no f32 round trip).
    cd = we_ref.dtype
    acc = (jnp.dot(xe.astype(cd), we_ref[...], preferred_element_type=jnp.float32)
           + jnp.dot(xo.astype(cd), wo_ref[...], preferred_element_type=jnp.float32))
    y = inv * (acc - mean * cs_ref[...]) + b_ref[...]
    o_ref[...] = y.reshape(tr, wop, c2).astype(o_ref.dtype)


def _vmem_capacity_bytes():
    """Physical VMEM per core; conservative (v7x-sized) fallback on failure."""
    try:
        info = pltpu.get_tpu_info()
        cap = getattr(info, "vmem_capacity_bytes", None)
        if cap:
            return int(cap)
    except Exception:
        pass
    return 64 << 20


def _pick_row_tile(R, Wop, C2, in_bytes, out_bytes, w_bytes, vmem_limit):
    """Largest row-group tile that fits a conservative VMEM model while
    leaving >= ~8 grid steps (pipelining; 2 TCs on v7x) whenever each step
    still covers >= ~512 output rows."""
    budget = int(vmem_limit * 0.55)            # headroom for compiler scratch
    per_rg = Wop * C2 * (4 * in_bytes          # input block, double-buffered
                         + 2 * out_bytes       # output block, double-buffered
                         + 6 * 4)              # f32 temporaries in the kernel
    fixed = 2 * (2 * C2 * C2 * w_bytes) + 2 * 2 * C2 * 4   # weights + colsum/bias
    tr_vmem = max(1, (budget - fixed) // per_rg)
    tr_steps = pl.cdiv(R, 8)                   # -> >= ~8 grid steps
    tr_rows = pl.cdiv(512, Wop)                # -> >= ~512 output rows / step
    tr = int(max(1, min(tr_vmem, R, max(tr_steps, tr_rows))))
    # Prefer an even number of steps so both v7x TensorCores stay balanced.
    steps = pl.cdiv(R, tr)
    if steps > 2 and steps % 2 == 1:
        tr = int(max(1, pl.cdiv(R, steps + 1)))
    return tr


def patch_merging_forward(x, H, W, gamma, beta, weight, *, mxu_bf16=None):
    """x: (B, H*W, C); gamma/beta: (4C,); weight: (2C, 4C) (PyTorch layout).

    Returns (B, ceil(H/2)*ceil(W/2), 2C).
    """
    B, L, C = x.shape
    assert L == H * W, "input feature has wrong size"
    C2 = 2 * C

    xv = x.reshape(B, H, W, C)
    # TODO(synk): for odd H/W this wrapper-side pad is a full extra HBM copy;
    # fold it into the kernel (clamped index_map / masked last row+col) if odd
    # feature maps are common.
    if (H % 2 == 1) or (W % 2 == 1):
        xv = jnp.pad(xv, ((0, 0), (0, H % 2), (0, W % 2), (0, 0)))
    Hp, Wp = xv.shape[1], xv.shape[2]
    Ho, Wo = Hp // 2, Wp // 2
    R = B * Ho                                  # one row-group per (b, ho)

    # Free view: for each row group the even / odd image rows are two
    # contiguous (Wo, 2C) slabs along dim 1 ([x0|x2] and [x1|x3] per position).
    x4 = xv.reshape(R, 2, Wo, C2)

    # ---- fold LayerNorm affine into the reduction weight (tiny, wrapper) ----
    gamma_f = gamma.astype(jnp.float32)
    beta_f = beta.astype(jnp.float32)
    wt = weight.astype(jnp.float32).T           # (4C, 2C); rows = [x0,x1,x2,x3]
    wp = gamma_f[:, None] * wt                  # gamma folded
    w_even = jnp.concatenate([wp[0:C], wp[2 * C:3 * C]], axis=0)      # [x0 | x2]
    w_odd = jnp.concatenate([wp[C:2 * C], wp[3 * C:4 * C]], axis=0)   # [x1 | x3]
    cs2 = jnp.sum(wp, axis=0).reshape(1, C2)    # colsum(W'), for the -mean term
    b2 = (beta_f @ wt).reshape(1, C2)           # LN beta folded through Linear

    if mxu_bf16 is None:
        mxu_bf16 = (x.dtype == jnp.bfloat16)
    compute_dtype = jnp.bfloat16 if mxu_bf16 else jnp.float32
    w_even = w_even.astype(compute_dtype)
    w_odd = w_odd.astype(compute_dtype)

    # ---- tile sizing ----
    Wop = pl.cdiv(Wo, 8) * 8                    # sublane-aligned block width
    in_b = x.dtype.itemsize
    w_b = 2 if mxu_bf16 else 4
    vmem_limit = min(max((_vmem_capacity_bytes() * 3) // 4, 32 << 20), 96 << 20)
    tr = _pick_row_tile(R, Wop, C2, in_b, in_b, w_b, vmem_limit)
    grid_m = pl.cdiv(R, tr)

    def call(x4_arr, wo_arr):
        return pl.pallas_call(
            _patch_merge_kernel,
            out_shape=jax.ShapeDtypeStruct((R, wo_arr, C2), x.dtype),
            grid_spec=pltpu.PrefetchScalarGridSpec(
                num_scalar_prefetch=0,
                grid=(grid_m,),
                in_specs=[
                    pl.BlockSpec((tr, 2, Wop, C2), lambda i: (i, 0, 0, 0)),
                    pl.BlockSpec((C2, C2), lambda i: (0, 0)),
                    pl.BlockSpec((C2, C2), lambda i: (0, 0)),
                    pl.BlockSpec((1, C2), lambda i: (0, 0)),
                    pl.BlockSpec((1, C2), lambda i: (0, 0)),
                ],
                out_specs=pl.BlockSpec((tr, Wop, C2), lambda i: (i, 0, 0)),
            ),
            compiler_params=pltpu.CompilerParams(
                dimension_semantics=("parallel",),
                vmem_limit_bytes=int(vmem_limit),
            ),
        )(x4_arr, w_even, w_odd, cs2, b2)

    if Wop == Wo:
        out3d = call(x4, Wo)
    else:
        try:
            # Block is Wop (>Wo) wide: the ragged w rows are garbage on read
            # (rows are independent) and masked on the output store.
            out3d = call(x4, Wo)
        except Exception:
            # Conservative fallback: pad W in HBM so block width == array width.
            xvp = jnp.pad(xv, ((0, 0), (0, 0), (0, 2 * (Wop - Wo)), (0, 0)))
            out3d = call(xvp.reshape(R, 2, Wop, C2), Wop)[:, :Wo, :]

    return out3d.reshape(B, Ho * Wo, C2)


def _reference(x, H, W, gamma, beta, weight):
    B, L, C = x.shape
    xv = x.reshape(B, H, W, C)
    if (H % 2 == 1) or (W % 2 == 1):
        xv = jnp.pad(xv, ((0, 0), (0, H % 2), (0, W % 2), (0, 0)))
    x0 = xv[:, 0::2, 0::2, :]
    x1 = xv[:, 1::2, 0::2, :]
    x2 = xv[:, 0::2, 1::2, :]
    x3 = xv[:, 1::2, 1::2, :]
    xc = jnp.concatenate([x0, x1, x2, x3], -1).reshape(B, -1, 4 * C)
    xc = xc.astype(jnp.float32)
    mean = jnp.mean(xc, -1, keepdims=True)
    var = jnp.mean((xc - mean) ** 2, -1, keepdims=True)
    xn = (xc - mean) * jax.lax.rsqrt(var + LN_EPS) * gamma.astype(jnp.float32) \
        + beta.astype(jnp.float32)
    return jnp.einsum("blk,ok->blo", xn, weight.astype(jnp.float32))


if __name__ == "__main__":
    # module constructed as PatchMerging(dim=2*C)  =>  self.dim = C
    key = jax.random.PRNGKey(0)

    def make_inputs(k, B, H, W, C, dtype):
        kx, kg, kb, kw = jax.random.split(k, 4)
        x = jax.random.normal(kx, (B, H * W, C), dtype=jnp.float32).astype(dtype)
        gamma = (jax.random.normal(kg, (4 * C,), jnp.float32) * 0.1 + 1.0).astype(dtype)
        beta = (jax.random.normal(kb, (4 * C,), jnp.float32) * 0.1).astype(dtype)
        weight = (jax.random.normal(kw, (2 * C, 4 * C), jnp.float32) * 0.05).astype(dtype)
        return x, gamma, beta, weight

    cases = [
        # (B, H, W, C, dtype, tol)
        (2, 16, 16, 8, jnp.float32, 2e-4),   # even H/W, Wo % 8 == 0
        (2, 14, 14, 8, jnp.float32, 2e-4),   # Swin-like Wo = 7 (ragged w rows)
        (1, 15, 13, 8, jnp.float32, 2e-4),   # odd H/W -> wrapper pad path
        (2, 16, 16, 8, jnp.bfloat16, 4e-2),  # bf16 operands straight to MXU
    ]
    for idx, (B, H, W, C, dtype, tol) in enumerate(cases):
        k = jax.random.fold_in(key, idx)
        x, gamma, beta, weight = make_inputs(k, B, H, W, C, dtype)

        out = patch_merging_forward(x, H, W, gamma, beta, weight)
        out = jax.block_until_ready(out)

        ref = _reference(x, H, W, gamma, beta, weight)
        Ho, Wo = (H + 1) // 2, (W + 1) // 2
        assert out.shape == (B, Ho * Wo, 2 * C), (out.shape, (B, Ho * Wo, 2 * C))
        err = jnp.max(jnp.abs(out.astype(jnp.float32) - ref))
        assert jnp.allclose(out.astype(jnp.float32), ref, atol=tol, rtol=tol), (
            f"case {idx}: max abs err {err:.3e}")

    print("KERNEL_OK")
</pallas_src>

<mosaic_0001>
module attributes {stable_mosaic.version = 11 : i64} {
  func.func @_patch_merge_kernel(%arg0: i32, %arg1: memref<16x2x8x16xf32, #tpu.memory_space<vmem>>, %arg2: memref<16x16xf32, #tpu.memory_space<vmem>>, %arg3: memref<16x16xf32, #tpu.memory_space<vmem>>, %arg4: memref<1x16xf32, #tpu.memory_space<vmem>>, %arg5: memref<1x16xf32, #tpu.memory_space<vmem>>, %arg6: memref<16x8x16xf32, #tpu.memory_space<vmem>>) attributes {dimension_semantics = [#tpu.dimension_semantics<parallel>], iteration_bounds = array<i64: 1>, scalar_prefetch = 0 : i64, scratch_operands = 0 : i64, tpu.core_type = #tpu.core_type<tc>, window_params = [{transform_indices = @transform_0, window_bounds = array<i64: 16, 2, 8, 16>}, {pipeline_mode = #tpu.pipeline_mode<synchronous>, transform_indices = @transform_1, window_bounds = array<i64: 16, 16>}, {pipeline_mode = #tpu.pipeline_mode<synchronous>, transform_indices = @transform_2, window_bounds = array<i64: 16, 16>}, {pipeline_mode = #tpu.pipeline_mode<synchronous>, transform_indices = @transform_3, window_bounds = array<i64: 1, 16>}, {pipeline_mode = #tpu.pipeline_mode<synchronous>, transform_indices = @transform_4, window_bounds = array<i64: 1, 16>}, {transform_indices = @transform_5, window_bounds = array<i64: 16, 8, 16>}]} {
    %c0 = arith.constant 0 : index
    %c0_0 = arith.constant 0 : index
    %c0_1 = arith.constant 0 : index
    %c0_2 = arith.constant 0 : index
    %0 = vector.load %arg1[%c0, %c0_0, %c0_1, %c0_2] : memref<16x2x8x16xf32, #tpu.memory_space<vmem>>, vector<16x1x8x16xf32>
    %1 = vector.shape_cast %0 : vector<16x1x8x16xf32> to vector<16x8x16xf32>
    %2 = vector.shape_cast %1 : vector<16x8x16xf32> to vector<128x16xf32>
    %c0_3 = arith.constant 0 : index
    %c1 = arith.constant 1 : index
    %c0_4 = arith.constant 0 : index
    %c0_5 = arith.constant 0 : index
    %3 = vector.load %arg1[%c0_3, %c1, %c0_4, %c0_5] : memref<16x2x8x16xf32, #tpu.memory_space<vmem>>, vector<16x1x8x16xf32>
    %4 = vector.shape_cast %3 : vector<16x1x8x16xf32> to vector<16x8x16xf32>
    %5 = vector.shape_cast %4 : vector<16x8x16xf32> to vector<128x16xf32>
    %cst = arith.constant dense<0.000000e+00> : vector<128xf32>
    %6 = vector.multi_reduction <add>, %2, %cst [1] : vector<128x16xf32> to vector<128xf32>
    %7 = vector.shape_cast %6 : vector<128xf32> to vector<128x1xf32>
    %cst_6 = arith.constant dense<0.000000e+00> : vector<128xf32>
    %8 = vector.multi_reduction <add>, %5, %cst_6 [1] : vector<128x16xf32> to vector<128xf32>
    %9 = vector.shape_cast %8 : vector<128xf32> to vector<128x1xf32>
    %10 = arith.addf %7, %9 : vector<128x1xf32>
    %11 = arith.mulf %2, %2 : vector<128x16xf32>
    %cst_7 = arith.constant dense<0.000000e+00> : vector<128xf32>
    %12 = vector.multi_reduction <add>, %11, %cst_7 [1] : vector<128x16xf32> to vector<128xf32>
    %13 = vector.shape_cast %12 : vector<128xf32> to vector<128x1xf32>
    %14 = arith.mulf %5, %5 : vector<128x16xf32>
    %cst_8 = arith.constant dense<0.000000e+00> : vector<128xf32>
    %15 = vector.multi_reduction <add>, %14, %cst_8 [1] : vector<128x16xf32> to vector<128xf32>
    %16 = vector.shape_cast %15 : vector<128xf32> to vector<128x1xf32>
    %17 = arith.addf %13, %16 : vector<128x1xf32>
    %cst_9 = arith.constant 3.125000e-02 : f32
    %18 = vector.broadcast %cst_9 : f32 to vector<128x1xf32>
    %19 = arith.mulf %10, %18 : vector<128x1xf32>
    %cst_10 = arith.constant 3.125000e-02 : f32
    %20 = vector.broadcast %cst_10 : f32 to vector<128x1xf32>
    %21 = arith.mulf %17, %20 : vector<128x1xf32>
    %22 = arith.mulf %19, %19 : vector<128x1xf32>
    %23 = arith.subf %21, %22 : vector<128x1xf32>
    %cst_11 = arith.constant 0.000000e+00 : f32
    %24 = vector.broadcast %cst_11 : f32 to vector<128x1xf32>
    %25 = arith.maximumf %23, %24 : vector<128x1xf32>
    %cst_12 = arith.constant 9.99999974E-6 : f32
    %26 = vector.broadcast %cst_12 : f32 to vector<128x1xf32>
    %27 = arith.addf %25, %26 : vector<128x1xf32>
    %28 = math.rsqrt %27 : vector<128x1xf32>
    %c0_13 = arith.constant 0 : index
    %c0_14 = arith.constant 0 : index
    %29 = vector.load %arg2[%c0_13, %c0_14] : memref<16x16xf32, #tpu.memory_space<vmem>>, vector<16x16xf32>
    %cst_15 = arith.constant dense<0.000000e+00> : vector<128x16xf32>
    %30 = tpu.matmul %2, %29, %cst_15 {dimension_numbers = #tpu.dot_dimension_numbers<[1], [0], [0], [1], [0, 0, 1, 1], [], []>} : vector<128x16xf32>, vector<16x16xf32>, vector<128x16xf32> -> vector<128x16xf32>
    %c0_16 = arith.constant 0 : index
    %c0_17 = arith.constant 0 : index
    %31 = vector.load %arg3[%c0_16, %c0_17] : memref<16x16xf32, #tpu.memory_space<vmem>>, vector<16x16xf32>
    %cst_18 = arith.constant dense<0.000000e+00> : vector<128x16xf32>
    %32 = tpu.matmul %5, %31, %cst_18 {dimension_numbers = #tpu.dot_dimension_numbers<[1], [0], [0], [1], [0, 0, 1, 1], [], []>} : vector<128x16xf32>, vector<16x16xf32>, vector<128x16xf32> -> vector<128x16xf32>
    %33 = arith.addf %30, %32 : vector<128x16xf32>
    %c0_19 = arith.constant 0 : index
    %c0_20 = arith.constant 0 : index
    %34 = vector.load %arg4[%c0_19, %c0_20] : memref<1x16xf32, #tpu.memory_space<vmem>>, vector<1x16xf32>
    %35 = vector.broadcast %19 : vector<128x1xf32> to vector<128x16xf32>
    %36 = vector.broadcast %34 : vector<1x16xf32> to vector<128x16xf32>
    %37 = arith.mulf %35, %36 : vector<128x16xf32>
    %38 = arith.subf %33, %37 : vector<128x16xf32>
    %39 = vector.broadcast %28 : vector<128x1xf32> to vector<128x16xf32>
    %40 = arith.mulf %39, %38 : vector<128x16xf32>
    %c0_21 = arith.constant 0 : index
    %c0_22 = arith.constant 0 : index
    %41 = vector.load %arg5[%c0_21, %c0_22] : memref<1x16xf32, #tpu.memory_space<vmem>>, vector<1x16xf32>
    %42 = vector.broadcast %41 : vector<1x16xf32> to vector<128x16xf32>
    %43 = arith.addf %40, %42 : vector<128x16xf32>
    %44 = vector.shape_cast %43 : vector<128x16xf32> to vector<16x8x16xf32>
    %c0_23 = arith.constant 0 : index
    %c0_24 = arith.constant 0 : index
    %c0_25 = arith.constant 0 : index
    %45 = vector.load %arg6[%c0_23, %c0_24, %c0_25] : memref<16x8x16xf32, #tpu.memory_space<vmem>>, vector<16x8x16xf32>
    tpu.vector_store %arg6[%c0_23, %c0_24, %c0_25], %44 {strides = array<i32>} : memref<16x8x16xf32, #tpu.memory_space<vmem>>, vector<16x8x16xf32>,
    return
  }
  func.func @transform_0(%arg0: i32) -> (i32, i32, i32, i32) {
    %c0_i32 = arith.constant 0 : i32
    %c0_i32_0 = arith.constant 0 : i32
    %c0_i32_1 = arith.constant 0 : i32
    %c0_i32_2 = arith.constant 0 : i32
    return %arg0, %c0_i32, %c0_i32_0, %c0_i32_1 : i32, i32, i32, i32
  }
  func.func @transform_1(%arg0: i32) -> (i32, i32) {
    %c0_i32 = arith.constant 0 : i32
    %c0_i32_0 = arith.constant 0 : i32
    %c0_i32_1 = arith.constant 0 : i32
    return %c0_i32, %c0_i32_0 : i32, i32
  }
  func.func @transform_2(%arg0: i32) -> (i32, i32) {
    %c0_i32 = arith.constant 0 : i32
    %c0_i32_0 = arith.constant 0 : i32
    %c0_i32_1 = arith.constant 0 : i32
    return %c0_i32, %c0_i32_0 : i32, i32
  }
  func.func @transform_3(%arg0: i32) -> (i32, i32) {
    %c0_i32 = arith.constant 0 : i32
    %c0_i32_0 = arith.constant 0 : i32
    %c0_i32_1 = arith.constant 0 : i32
    return %c0_i32, %c0_i32_0 : i32, i32
  }
  func.func @transform_4(%arg0: i32) -> (i32, i32) {
    %c0_i32 = arith.constant 0 : i32
    %c0_i32_0 = arith.constant 0 : i32
    %c0_i32_1 = arith.constant 0 : i32
    return %c0_i32, %c0_i32_0 : i32, i32
  }
  func.func @transform_5(%arg0: i32) -> (i32, i32, i32) {
    %c0_i32 = arith.constant 0 : i32
    %c0_i32_0 = arith.constant 0 : i32
    %c0_i32_1 = arith.constant 0 : i32
    return %arg0, %c0_i32, %c0_i32_0 : i32, i32, i32
  }
}

</mosaic_0001>

<llo_original>
// kernel: tpu_custom_call.1
$region0: #{tpu_custom_call.1}
  #allocation0 [shape = 'u32[]', space=smem, size = 0x4, offset = 0x4, fixed_abs, tag = 'smem constant byte address 0x4 - core index']
  #allocation1 [shape = 'u32[144,128]{1,0:T(1,128)}', space=vmem, size = 0x12000, scoped, tag = 'internal scratch']
  %s0 = inlined_call_operand.hbm [shape: f32[16,2,8,16], index: 0, kind: input, shape index: {}]
  %s1 = inlined_call_operand.hbm [shape: f32[16,16], index: 1, kind: input, shape index: {}]
  %s2 = inlined_call_operand.hbm [shape: f32[16,16], index: 2, kind: input, shape index: {}]
  %s3 = inlined_call_operand.vmem [shape: f32[1,16], index: 3, kind: input, shape index: {}]
  %s4 = inlined_call_operand.vmem [shape: f32[1,16], index: 4, kind: input, shape index: {}]
  %s5 = inlined_call_operand.hbm [shape: f32[16,8,16], index: 5, kind: output, shape index: {}]
  %s6 = sld [smem:[#allocation0]]
  $region42: #{tpu_custom_call.1} parent=0
    _
  %s8 = ssub.s32 1, %s6
  %s9 = scalar_select 0, %s8, %s6
  $region1: #{tpu_custom_call.1} parent=0
    #allocation2 [shape = 'u8[131072]{0}', space=vmem, size = 0x20000, scoped, tag = 'input window, operand 0, single buffered']
    #allocation3 [shape = 's32[1]{0}', space=sflag, size = 0x4, scoped, tag = 'scoped memory for tpu_custom_call.1']
    #allocation4 [shape = 's32[1]{0}', space=sflag, size = 0x4, scoped, tag = 'scoped memory for tpu_custom_call.1']
    #allocation5 [shape = 'u8[8192]{0}', space=vmem, size = 0x2000, scoped, tag = 'input window, operand 1, single buffered']
    #allocation6 [shape = 's32[1]{0}', space=sflag, size = 0x4, scoped, tag = 'scoped memory for tpu_custom_call.1']
    #allocation7 [shape = 'u8[8192]{0}', space=vmem, size = 0x2000, scoped, tag = 'input window, operand 2, single buffered']
    #allocation8 [shape = 'u8[65536]{0}', space=vmem, size = 0x10000, scoped, tag = 'output window, operand 0, single buffered']
    %10 = vsyncpa [#allocation3], 0
    %11 = vsyncpa [#allocation6], 0
    %12 = vsyncpa [#allocation4], 0
    // Predicated region
    $region2: #{tpu_custom_call.1} parent=1 // pred_check
      _
    $region3: #{tpu_custom_call.1} parent=1 // pred_check_branch
      %14 = sbr.rel (0) target = $region5
    $region4: #{tpu_custom_call.1} parent=1 // pred_region
      %s16 = ssub.s32 4096, 4096
      %17 = vsyncadd [#allocation3], %s16
      %s18 = sshll.u32 [#allocation2], 4
      %s19 = int_to_ptr.vmem [resolvable:$true] %s18
      %24 = dma.hbm_to_vmem [thread:$0]  %s0, 4096, %s19, [#allocation3], 128, 128, 8
    $region5: #{tpu_custom_call.1} parent=1 // pred_fallthru
      _
    // Predicated region
    $region6: #{tpu_custom_call.1} parent=1 // pred_check
      _
    $region7: #{tpu_custom_call.1} parent=1 // pred_check_branch
      %26 = sbr.rel (0) target = $region9
    $region8: #{tpu_custom_call.1} parent=1 // pred_region
      %s28 = ssub.s32 256, 256
      %29 = vsyncadd [#allocation6], %s28
      %s30 = sshll.u32 [#allocation5], 4
      %s31 = int_to_ptr.vmem [resolvable:$true] %s30
      %36 = dma.hbm_to_vmem [thread:$0]  %s1, 256, %s31, [#allocation6], 128, 128, 8
    $region9: #{tpu_custom_call.1} parent=1 // pred_fallthru
      _
    // Predicated region
    $region10: #{tpu_custom_call.1} parent=1 // pred_check
      _
    $region11: #{tpu_custom_call.1} parent=1 // pred_check_branch
      %38 = sbr.rel (0) target = $region13
    $region12: #{tpu_custom_call.1} parent=1 // pred_region
      %s40 = ssub.s32 256, 256
      %41 = vsyncadd [#allocation6], %s40
      %s42 = sshll.u32 [#allocation7], 4
      %s43 = int_to_ptr.vmem [resolvable:$true] %s42
      %48 = dma.hbm_to_vmem [thread:$0]  %s2, 256, %s43, [#allocation6], 128, 128, 8
    $region13: #{tpu_custom_call.1} parent=1 // pred_fallthru
      _
    // Predicated region
    $region14: #{tpu_custom_call.1} parent=1 // pred_check
      _
    $region15: #{tpu_custom_call.1} parent=1 // pred_check_branch
      %50 = sbr.rel (0) target = $region17
    $region16: #{tpu_custom_call.1} parent=1 // pred_region
      _
    $region17: #{tpu_custom_call.1} parent=1 // pred_fallthru
      _
    // Predicated region
    $region18: #{tpu_custom_call.1} parent=1 // pred_check
      _
    $region19: #{tpu_custom_call.1} parent=1 // pred_check_branch
      %52 = sbr.rel (0) target = $region21
    $region20: #{tpu_custom_call.1} parent=1 // pred_region
      _
    $region21: #{tpu_custom_call.1} parent=1 // pred_fallthru
      _
    // Predicated region
    $region22: #{tpu_custom_call.1} parent=1 // pred_check
      _
    $region23: #{tpu_custom_call.1} parent=1 // pred_check_branch
      %54 = sbr.rel (0) target = $region25
    $region24: #{tpu_custom_call.1} parent=1 // pred_region
      %55 = dma.done [#allocation3], 4096
    $region25: #{tpu_custom_call.1} parent=1 // pred_fallthru
      _
    // Predicated region
    $region26: #{tpu_custom_call.1} parent=1 // pred_check
      _
    $region27: #{tpu_custom_call.1} parent=1 // pred_check_branch
      %57 = sbr.rel (0) target = $region29
    $region28: #{tpu_custom_call.1} parent=1 // pred_region
      %58 = dma.done [#allocation6], 256
    $region29: #{tpu_custom_call.1} parent=1 // pred_fallthru
      _
    // Predicated region
    $region30: #{tpu_custom_call.1} parent=1 // pred_check
      _
    $region31: #{tpu_custom_call.1} parent=1 // pred_check_branch
      %60 = sbr.rel (0) target = $region33
    $region32: #{tpu_custom_call.1} parent=1 // pred_region
      %61 = dma.done [#allocation6], 256
    $region33: #{tpu_custom_call.1} parent=1 // pred_fallthru
      _
    %v62 = vld [vmem:[#allocation2] sm:$0xff]
    %v63 = vld [vmem:[#allocation2 + $0x10] sm:$0xff]
    %v64 = vld [vmem:[#allocation2 + $0x20] sm:$0xff]
    %v65 = vld [vmem:[#allocation2 + $0x30] sm:$0xff]
    %v66 = vld [vmem:[#allocation2 + $0x40] sm:$0xff]
    %v67 = vld [vmem:[#allocation2 + $0x50] sm:$0xff]
    %v68 = vld [vmem:[#allocation2 + $0x60] sm:$0xff]
    %v69 = vld [vmem:[#allocation2 + $0x70] sm:$0xff]
    %v70 = vld [vmem:[#allocation2 + $0x80] sm:$0xff]
    %v71 = vld [vmem:[#allocation2 + $0x90] sm:$0xff]
    %v72 = vld [vmem:[#allocation2 + $0xa0] sm:$0xff]
    %v73 = vld [vmem:[#allocation2 + $0xb0] sm:$0xff]
    %v74 = vld [vmem:[#allocation2 + $0xc0] sm:$0xff]
    %v75 = vld [vmem:[#allocation2 + $0xd0] sm:$0xff]
    %v76 = vld [vmem:[#allocation2 + $0xe0] sm:$0xff]
    %v77 = vld [vmem:[#allocation2 + $0xf0] sm:$0xff]
    %s78 = scalar_lea.vmem [#allocation2], 8
    %v79 = vld [vmem:[%s78] sm:$0xff]
    %v80 = vld [vmem:[%s78 + $0x10] sm:$0xff]
    %v81 = vld [vmem:[%s78 + $0x20] sm:$0xff]
    %v82 = vld [vmem:[%s78 + $0x30] sm:$0xff]
    %v83 = vld [vmem:[%s78 + $0x40] sm:$0xff]
    %v84 = vld [vmem:[%s78 + $0x50] sm:$0xff]
    %v85 = vld [vmem:[%s78 + $0x60] sm:$0xff]
    %v86 = vld [vmem:[%s78 + $0x70] sm:$0xff]
    %v87 = vld [vmem:[%s78 + $0x80] sm:$0xff]
    %v88 = vld [vmem:[%s78 + $0x90] sm:$0xff]
    %v89 = vld [vmem:[%s78 + $0xa0] sm:$0xff]
    %v90 = vld [vmem:[%s78 + $0xb0] sm:$0xff]
    %v91 = vld [vmem:[%s78 + $0xc0] sm:$0xff]
    %v92 = vld [vmem:[%s78 + $0xd0] sm:$0xff]
    %v93 = vld [vmem:[%s78 + $0xe0] sm:$0xff]
    %v94 = vld [vmem:[%s78 + $0xf0] sm:$0xff]
    %vm95 = vcmask 130048
    %v96 = vsel %vm95, %v62, 0.0
    %97 = vadd.xlane.f32.xlu0 %v96
    %v98 = vpop.xlane.xlu0 %97
    %v99 = vsel %vm95, %v63, 0.0
    %100 = vadd.xlane.f32.xlu0 %v99
    %v101 = vpop.xlane.xlu0 %100
    %v102 = vsel %vm95, %v64, 0.0
    %103 = vadd.xlane.f32.xlu0 %v102
    %v104 = vpop.xlane.xlu0 %103
    %v105 = vsel %vm95, %v65, 0.0
    %106 = vadd.xlane.f32.xlu0 %v105
    %v107 = vpop.xlane.xlu0 %106
    %v108 = vsel %vm95, %v66, 0.0
    %109 = vadd.xlane.f32.xlu0 %v108
    %v110 = vpop.xlane.xlu0 %109
    %v111 = vsel %vm95, %v67, 0.0
    %112 = vadd.xlane.f32.xlu0 %v111
    %v113 = vpop.xlane.xlu0 %112
    %v114 = vsel %vm95, %v68, 0.0
    %115 = vadd.xlane.f32.xlu0 %v114
    %v116 = vpop.xlane.xlu0 %115
    %v117 = vsel %vm95, %v69, 0.0
    %118 = vadd.xlane.f32.xlu0 %v117
    %v119 = vpop.xlane.xlu0 %118
    %v120 = vsel %vm95, %v70, 0.0
    %121 = vadd.xlane.f32.xlu0 %v120
    %v122 = vpop.xlane.xlu0 %121
    %v123 = vsel %vm95, %v71, 0.0
    %124 = vadd.xlane.f32.xlu0 %v123
    %v125 = vpop.xlane.xlu0 %124
    %v126 = vsel %vm95, %v72, 0.0
    %127 = vadd.xlane.f32.xlu0 %v126
    %v128 = vpop.xlane.xlu0 %127
    %v129 = vsel %vm95, %v73, 0.0
    %130 = vadd.xlane.f32.xlu0 %v129
    %v131 = vpop.xlane.xlu0 %130
    %v132 = vsel %vm95, %v74, 0.0
    %133 = vadd.xlane.f32.xlu0 %v132
    %v134 = vpop.xlane.xlu0 %133
    %v135 = vsel %vm95, %v75, 0.0
    %136 = vadd.xlane.f32.xlu0 %v135
    %v137 = vpop.xlane.xlu0 %136
    %v138 = vsel %vm95, %v76, 0.0
    %139 = vadd.xlane.f32.xlu0 %v138
    %v140 = vpop.xlane.xlu0 %139
    %v141 = vsel %vm95, %v77, 0.0
    %142 = vadd.xlane.f32.xlu0 %v141
    %v143 = vpop.xlane.xlu0 %142
    %v144 = vsel %vm95, %v79, 0.0
    %145 = vadd.xlane.f32.xlu0 %v144
    %v146 = vpop.xlane.xlu0 %145
    %v147 = vsel %vm95, %v80, 0.0
    %148 = vadd.xlane.f32.xlu0 %v147
    %v149 = vpop.xlane.xlu0 %148
    %v150 = vsel %vm95, %v81, 0.0
    %151 = vadd.xlane.f32.xlu0 %v150
    %v152 = vpop.xlane.xlu0 %151
    %v153 = vsel %vm95, %v82, 0.0
    %154 = vadd.xlane.f32.xlu0 %v153
    %v155 = vpop.xlane.xlu0 %154
    %v156 = vsel %vm95, %v83, 0.0
    %157 = vadd.xlane.f32.xlu0 %v156
    %v158 = vpop.xlane.xlu0 %157
    %v159 = vsel %vm95, %v84, 0.0
    %160 = vadd.xlane.f32.xlu0 %v159
    %v161 = vpop.xlane.xlu0 %160
    %v162 = vsel %vm95, %v85, 0.0
    %163 = vadd.xlane.f32.xlu0 %v162
    %v164 = vpop.xlane.xlu0 %163
    %v165 = vsel %vm95, %v86, 0.0
    %166 = vadd.xlane.f32.xlu0 %v165
    %v167 = vpop.xlane.xlu0 %166
    %v168 = vsel %vm95, %v87, 0.0
    %169 = vadd.xlane.f32.xlu0 %v168
    %v170 = vpop.xlane.xlu0 %169
    %v171 = vsel %vm95, %v88, 0.0
    %172 = vadd.xlane.f32.xlu0 %v171
    %v173 = vpop.xlane.xlu0 %172
    %v174 = vsel %vm95, %v89, 0.0
    %175 = vadd.xlane.f32.xlu0 %v174
    %v176 = vpop.xlane.xlu0 %175
    %v177 = vsel %vm95, %v90, 0.0
    %178 = vadd.xlane.f32.xlu0 %v177
    %v179 = vpop.xlane.xlu0 %178
    %v180 = vsel %vm95, %v91, 0.0
    %181 = vadd.xlane.f32.xlu0 %v180
    %v182 = vpop.xlane.xlu0 %181
    %v183 = vsel %vm95, %v92, 0.0
    %184 = vadd.xlane.f32.xlu0 %v183
    %v185 = vpop.xlane.xlu0 %184
    %v186 = vsel %vm95, %v93, 0.0
    %187 = vadd.xlane.f32.xlu0 %v186
    %v188 = vpop.xlane.xlu0 %187
    %v189 = vsel %vm95, %v94, 0.0
    %190 = vadd.xlane.f32.xlu0 %v189
    %v191 = vpop.xlane.xlu0 %190
    %v192 = vadd.f32 %v98, %v146
    %v193 = vadd.f32 %v101, %v149
    %v194 = vadd.f32 %v104, %v152
    %v195 = vadd.f32 %v107, %v155
    %v196 = vadd.f32 %v110, %v158
    %v197 = vadd.f32 %v113, %v161
    %v198 = vadd.f32 %v116, %v164
    %v199 = vadd.f32 %v119, %v167
    %v200 = vadd.f32 %v122, %v170
    %v201 = vadd.f32 %v125, %v173
    %v202 = vadd.f32 %v128, %v176
    %v203 = vadd.f32 %v131, %v179
    %v204 = vadd.f32 %v134, %v182
    %v205 = vadd.f32 %v137, %v185
    %v206 = vadd.f32 %v140, %v188
    %v207 = vadd.f32 %v143, %v191
    %v208 = vmul.f32 %v62, %v62
    %v209 = vmul.f32 %v63, %v63
    %v210 = vmul.f32 %v64, %v64
    %v211 = vmul.f32 %v65, %v65
    %v212 = vmul.f32 %v66, %v66
    %v213 = vmul.f32 %v67, %v67
    %v214 = vmul.f32 %v68, %v68
    %v215 = vmul.f32 %v69, %v69
    %v216 = vmul.f32 %v70, %v70
    %v217 = vmul.f32 %v71, %v71
    %v218 = vmul.f32 %v72, %v72
    %v219 = vmul.f32 %v73, %v73
    %v220 = vmul.f32 %v74, %v74
    %v221 = vmul.f32 %v75, %v75
    %v222 = vmul.f32 %v76, %v76
    %v223 = vmul.f32 %v77, %v77
    %v224 = vsel %vm95, %v208, 0.0
    %225 = vadd.xlane.f32.xlu0 %v224
    %v226 = vpop.xlane.xlu0 %225
    %v227 = vsel %vm95, %v209, 0.0
    %228 = vadd.xlane.f32.xlu0 %v227
    %v229 = vpop.xlane.xlu0 %228
    %v230 = vsel %vm95, %v210, 0.0
    %231 = vadd.xlane.f32.xlu0 %v230
    %v232 = vpop.xlane.xlu0 %231
    %v233 = vsel %vm95, %v211, 0.0
    %234 = vadd.xlane.f32.xlu0 %v233
    %v235 = vpop.xlane.xlu0 %234
    %v236 = vsel %vm95, %v212, 0.0
    %237 = vadd.xlane.f32.xlu0 %v236
    %v238 = vpop.xlane.xlu0 %237
    %v239 = vsel %vm95, %v213, 0.0
    %240 = vadd.xlane.f32.xlu0 %v239
    %v241 = vpop.xlane.xlu0 %240
    %v242 = vsel %vm95, %v214, 0.0
    %243 = vadd.xlane.f32.xlu0 %v242
    %v244 = vpop.xlane.xlu0 %243
    %v245 = vsel %vm95, %v215, 0.0
    %246 = vadd.xlane.f32.xlu0 %v245
    %v247 = vpop.xlane.xlu0 %246
    %v248 = vsel %vm95, %v216, 0.0
    %249 = vadd.xlane.f32.xlu0 %v248
    %v250 = vpop.xlane.xlu0 %249
    %v251 = vsel %vm95, %v217, 0.0
    %252 = vadd.xlane.f32.xlu0 %v251
    %v253 = vpop.xlane.xlu0 %252
    %v254 = vsel %vm95, %v218, 0.0
    %255 = vadd.xlane.f32.xlu0 %v254
    %v256 = vpop.xlane.xlu0 %255
    %v257 = vsel %vm95, %v219, 0.0
    %258 = vadd.xlane.f32.xlu0 %v257
    %v259 = vpop.xlane.xlu0 %258
    %v260 = vsel %vm95, %v220, 0.0
    %261 = vadd.xlane.f32.xlu0 %v260
    %v262 = vpop.xlane.xlu0 %261
    %v263 = vsel %vm95, %v221, 0.0
    %264 = vadd.xlane.f32.xlu0 %v263
    %v265 = vpop.xlane.xlu0 %264
    %v266 = vsel %vm95, %v222, 0.0
    %267 = vadd.xlane.f32.xlu0 %v266
    %v268 = vpop.xlane.xlu0 %267
    %v269 = vsel %vm95, %v223, 0.0
    %270 = vadd.xlane.f32.xlu0 %v269
    %v271 = vpop.xlane.xlu0 %270
    %v272 = vmul.f32 %v79, %v79
    %v273 = vmul.f32 %v80, %v80
    %v274 = vmul.f32 %v81, %v81
    %v275 = vmul.f32 %v82, %v82
    %v276 = vmul.f32 %v83, %v83
    %v277 = vmul.f32 %v84, %v84
    %v278 = vmul.f32 %v85, %v85
    %v279 = vmul.f32 %v86, %v86
    %v280 = vmul.f32 %v87, %v87
    %v281 = vmul.f32 %v88, %v88
    %v282 = vmul.f32 %v89, %v89
    %v283 = vmul.f32 %v90, %v90
    %v284 = vmul.f32 %v91, %v91
    %v285 = vmul.f32 %v92, %v92
    %v286 = vmul.f32 %v93, %v93
    %v287 = vmul.f32 %v94, %v94
    %v288 = vsel %vm95, %v272, 0.0
    %289 = vadd.xlane.f32.xlu0 %v288
    %v290 = vpop.xlane.xlu0 %289
    %v291 = vsel %vm95, %v273, 0.0
    %292 = vadd.xlane.f32.xlu0 %v291
    %v293 = vpop.xlane.xlu0 %292
    %v294 = vsel %vm95, %v274, 0.0
    %295 = vadd.xlane.f32.xlu0 %v294
    %v296 = vpop.xlane.xlu0 %295
    %v297 = vsel %vm95, %v275, 0.0
    %298 = vadd.xlane.f32.xlu0 %v297
    %v299 = vpop.xlane.xlu0 %298
    %v300 = vsel %vm95, %v276, 0.0
    %301 = vadd.xlane.f32.xlu0 %v300
    %v302 = vpop.xlane.xlu0 %301
    %v303 = vsel %vm95, %v277, 0.0
    %304 = vadd.xlane.f32.xlu0 %v303
    %v305 = vpop.xlane.xlu0 %304
    %v306 = vsel %vm95, %v278, 0.0
    %307 = vadd.xlane.f32.xlu0 %v306
    %v308 = vpop.xlane.xlu0 %307
    %v309 = vsel %vm95, %v279, 0.0
    %310 = vadd.xlane.f32.xlu0 %v309
    %v311 = vpop.xlane.xlu0 %310
    %v312 = vsel %vm95, %v280, 0.0
    %313 = vadd.xlane.f32.xlu0 %v312
    %v314 = vpop.xlane.xlu0 %313
    %v315 = vsel %vm95, %v281, 0.0
    %316 = vadd.xlane.f32.xlu0 %v315
    %v317 = vpop.xlane.xlu0 %316
    %v318 = vsel %vm95, %v282, 0.0
    %319 = vadd.xlane.f32.xlu0 %v318
    %v320 = vpop.xlane.xlu0 %319
    %v321 = vsel %vm95, %v283, 0.0
    %322 = vadd.xlane.f32.xlu0 %v321
    %v323 = vpop.xlane.xlu0 %322
    %v324 = vsel %vm95, %v284, 0.0
    %325 = vadd.xlane.f32.xlu0 %v324
    %v326 = vpop.xlane.xlu0 %325
    %v327 = vsel %vm95, %v285, 0.0
    %328 = vadd.xlane.f32.xlu0 %v327
    %v329 = vpop.xlane.xlu0 %328
    %v330 = vsel %vm95, %v286, 0.0
    %331 = vadd.xlane.f32.xlu0 %v330
    %v332 = vpop.xlane.xlu0 %331
    %v333 = vsel %vm95, %v287, 0.0
    %334 = vadd.xlane.f32.xlu0 %v333
    %v335 = vpop.xlane.xlu0 %334
    %v336 = vadd.f32 %v226, %v290
    %v337 = vadd.f32 %v229, %v293
    %v338 = vadd.f32 %v232, %v296
    %v339 = vadd.f32 %v235, %v299
    %v340 = vadd.f32 %v238, %v302
    %v341 = vadd.f32 %v241, %v305
    %v342 = vadd.f32 %v244, %v308
    %v343 = vadd.f32 %v247, %v311
    %v344 = vadd.f32 %v250, %v314
    %v345 = vadd.f32 %v253, %v317
    %v346 = vadd.f32 %v256, %v320
    %v347 = vadd.f32 %v259, %v323
    %v348 = vadd.f32 %v262, %v326
    %v349 = vadd.f32 %v265, %v329
    %v350 = vadd.f32 %v268, %v332
    %v351 = vadd.f32 %v271, %v335
    %v352 = vmul.f32 %v192, 0.03125
    %v353 = vmul.f32 %v193, 0.03125
    %v354 = vmul.f32 %v194, 0.03125
    %v355 = vmul.f32 %v195, 0.03125
    %v356 = vmul.f32 %v196, 0.03125
    %v357 = vmul.f32 %v197, 0.03125
    %v358 = vmul.f32 %v198, 0.03125
    %v359 = vmul.f32 %v199, 0.03125
    %v360 = vmul.f32 %v200, 0.03125
    %v361 = vmul.f32 %v201, 0.03125
    %v362 = vmul.f32 %v202, 0.03125
    %v363 = vmul.f32 %v203, 0.03125
    %v364 = vmul.f32 %v204, 0.03125
    %v365 = vmul.f32 %v205, 0.03125
    %v366 = vmul.f32 %v206, 0.03125
    %v367 = vmul.f32 %v207, 0.03125
    %v368 = vmul.f32 %v336, 0.03125
    %v369 = vmul.f32 %v337, 0.03125
    %v370 = vmul.f32 %v338, 0.03125
    %v371 = vmul.f32 %v339, 0.03125
    %v372 = vmul.f32 %v340, 0.03125
    %v373 = vmul.f32 %v341, 0.03125
    %v374 = vmul.f32 %v342, 0.03125
    %v375 = vmul.f32 %v343, 0.03125
    %v376 = vmul.f32 %v344, 0.03125
    %v377 = vmul.f32 %v345, 0.03125
    %v378 = vmul.f32 %v346, 0.03125
    %v379 = vmul.f32 %v347, 0.03125
    %v380 = vmul.f32 %v348, 0.03125
    %v381 = vmul.f32 %v349, 0.03125
    %v382 = vmul.f32 %v350, 0.03125
    %v383 = vmul.f32 %v351, 0.03125
    %v384 = vmul.f32 %v352, %v352
    %v385 = vmul.f32 %v353, %v353
    %v386 = vmul.f32 %v354, %v354
    %v387 = vmul.f32 %v355, %v355
    %v388 = vmul.f32 %v356, %v356
    %v389 = vmul.f32 %v357, %v357
    %v390 = vmul.f32 %v358, %v358
    %v391 = vmul.f32 %v359, %v359
    %v392 = vmul.f32 %v360, %v360
    %v393 = vmul.f32 %v361, %v361
    %v394 = vmul.f32 %v362, %v362
    %v395 = vmul.f32 %v363, %v363
    %v396 = vmul.f32 %v364, %v364
    %v397 = vmul.f32 %v365, %v365
    %v398 = vmul.f32 %v366, %v366
    %v399 = vmul.f32 %v367, %v367
    %v400 = vsub.f32 %v368, %v384
    %v401 = vsub.f32 %v369, %v385
    %v402 = vsub.f32 %v370, %v386
    %v403 = vsub.f32 %v371, %v387
    %v404 = vsub.f32 %v372, %v388
    %v405 = vsub.f32 %v373, %v389
    %v406 = vsub.f32 %v374, %v390
    %v407 = vsub.f32 %v375, %v391
    %v408 = vsub.f32 %v376, %v392
    %v409 = vsub.f32 %v377, %v393
    %v410 = vsub.f32 %v378, %v394
    %v411 = vsub.f32 %v379, %v395
    %v412 = vsub.f32 %v380, %v396
    %v413 = vsub.f32 %v381, %v397
    %v414 = vsub.f32 %v382, %v398
    %v415 = vsub.f32 %v383, %v399
    %v416 = vmax.f32 %v400, 0.0
    %v417 = vmax.f32 %v401, 0.0
    %v418 = vmax.f32 %v402, 0.0
    %v419 = vmax.f32 %v403, 0.0
    %v420 = vmax.f32 %v404, 0.0
    %v421 = vmax.f32 %v405, 0.0
    %v422 = vmax.f32 %v406, 0.0
    %v423 = vmax.f32 %v407, 0.0
    %v424 = vmax.f32 %v408, 0.0
    %v425 = vmax.f32 %v409, 0.0
    %v426 = vmax.f32 %v410, 0.0
    %v427 = vmax.f32 %v411, 0.0
    %v428 = vmax.f32 %v412, 0.0
    %v429 = vmax.f32 %v413, 0.0
    %v430 = vmax.f32 %v414, 0.0
    %v431 = vmax.f32 %v415, 0.0
    %v432 = vadd.f32 %v416, 1e-05
    %v433 = vadd.f32 %v417, 1e-05
    %v434 = vadd.f32 %v418, 1e-05
    %v435 = vadd.f32 %v419, 1e-05
    %v436 = vadd.f32 %v420, 1e-05
    %v437 = vadd.f32 %v421, 1e-05
    %v438 = vadd.f32 %v422, 1e-05
    %v439 = vadd.f32 %v423, 1e-05
    %v440 = vadd.f32 %v424, 1e-05
    %v441 = vadd.f32 %v425, 1e-05
    %v442 = vadd.f32 %v426, 1e-05
    %v443 = vadd.f32 %v427, 1e-05
    %v444 = vadd.f32 %v428, 1e-05
    %v445 = vadd.f32 %v429, 1e-05
    %v446 = vadd.f32 %v430, 1e-05
    %v447 = vadd.f32 %v431, 1e-05
    %v448 = vrsqrt.pop %v432
    %v449 = vrsqrt.pop %v433
    %v450 = vrsqrt.pop %v434
    %v451 = vrsqrt.pop %v435
    %v452 = vrsqrt.pop %v436
    %v453 = vrsqrt.pop %v437
    %v454 = vrsqrt.pop %v438
    %v455 = vrsqrt.pop %v439
    %v456 = vrsqrt.pop %v440
    %v457 = vrsqrt.pop %v441
    %v458 = vrsqrt.pop %v442
    %v459 = vrsqrt.pop %v443
    %v460 = vrsqrt.pop %v444
    %v461 = vrsqrt.pop %v445
    %v462 = vrsqrt.pop %v446
    %v463 = vrsqrt.pop %v447
    %v464 = vld [vmem:[#allocation5] sm:$0xff]
    %v465 = vld [vmem:[#allocation5 + $0x8] sm:$0xff]
    %v466 = vld [vmem:[#allocation7] sm:$0xff]
    %v467 = vld [vmem:[#allocation7 + $0x8] sm:$0xff]
    %v469 = vsel %vm95, %v79, 0
    %v472 = vsel %vm95, %v80, 0
    %v475 = vsel %vm95, %v81, 0
    %v478 = vsel %vm95, %v82, 0
    %v481 = vsel %vm95, %v83, 0
    %v484 = vsel %vm95, %v84, 0
    %v487 = vsel %vm95, %v85, 0
    %v490 = vsel %vm95, %v86, 0
    %v493 = vsel %vm95, %v87, 0
    %v496 = vsel %vm95, %v88, 0
    %v499 = vsel %vm95, %v89, 0
    %v502 = vsel %vm95, %v90, 0
    %v505 = vsel %vm95, %v91, 0
    %v508 = vsel %vm95, %v92, 0
    %v511 = vsel %vm95, %v93, 0
    %v514 = vsel %vm95, %v94, 0
    %516 = vmatprep.subr.mxu0 0.0
    %517 = vmatpush1.msra.mxu0 %v466
    %518 = vmatprep.subr.mxu0 0.0
    %519 = vmatpush1.msra.mxu0 %v467
    %520 = vmatprep.subr.mxu0 0.0
    %521 = vmatpush1.msra.mxu0 0.0
    %522 = vmatprep.subr.mxu0 0.0
    %523 = vmatpush1.msra.mxu0 0.0
    %524 = vmatprep.subr.mxu0 0.0
    %525 = vmatpush1.msra.mxu0 0.0
    %526 = vmatprep.subr.mxu0 0.0
    %527 = vmatpush1.msra.mxu0 0.0
    %528 = vmatprep.subr.mxu0 0.0
    %529 = vmatpush1.msra.mxu0 0.0
    %530 = vmatprep.subr.mxu0 0.0
    %531 = vmatpush1.msra.mxu0 0.0
    %532 = vmatprep.subr.mxu0 0.0
    %533 = vmatpush1.msra.mxu0 0.0
    %534 = vmatprep.subr.mxu0 0.0
    %535 = vmatpush1.msra.mxu0 0.0
    %536 = vmatprep.subr.mxu0 0.0
    %537 = vmatpush1.msra.mxu0 0.0
    %538 = vmatprep.subr.mxu0 0.0
    %539 = vmatpush1.msra.mxu0 0.0
    %540 = vmatprep.subr.mxu0 0.0
    %541 = vmatpush1.msra.mxu0 0.0
    %542 = vmatprep.subr.mxu0 0.0
    %543 = vmatpush1.msra.mxu0 0.0
    %544 = vmatprep.subr.mxu0 0.0
    %545 = vmatpush1.msra.mxu0 0.0
    %546 = vmatprep.subr.mxu0 0.0
    %547 = vmatpush1.msra.mxu0 0.0
    %548 = vmatprep.subr.mxu0 0.0
    %549 = vmatpush1.msra.mxu0 0.0
    %550 = vmatprep.subr.mxu0 0.0
    %551 = vmatpush1.msra.mxu0 0.0
    %552 = vmatprep.subr.mxu0 0.0
    %553 = vmatpush1.msra.mxu0 0.0
    %554 = vmatprep.subr.mxu0 0.0
    %555 = vmatpush1.msra.mxu0 0.0
    %556 = vmatprep.subr.mxu0 0.0
    %557 = vmatpush1.msra.mxu0 0.0
    %558 = vmatprep.subr.mxu0 0.0
    %559 = vmatpush1.msra.mxu0 0.0
    %560 = vmatprep.subr.mxu0 0.0
    %561 = vmatpush1.msra.mxu0 0.0
    %562 = vmatprep.subr.mxu0 0.0
    %563 = vmatpush1.msra.mxu0 0.0
    %564 = vmatprep.subr.mxu0 0.0
    %565 = vmatpush1.msra.mxu0 0.0
    %566 = vmatprep.subr.mxu0 0.0
    %567 = vmatpush1.msra.mxu0 0.0
    %568 = vmatprep.subr.mxu0 0.0
    %569 = vmatpush1.msra.mxu0 0.0
    %570 = vmatprep.subr.mxu0 0.0
    %571 = vmatpush1.msra.mxu0 0.0
    %572 = vmatprep.subr.mxu0 0.0
    %573 = vmatpush1.msra.mxu0 0.0
    %574 = vmatprep.subr.mxu0 0.0
    %575 = vmatpush1.msra.mxu0 0.0
    %576 = vmatprep.subr.mxu0 0.0
    %577 = vmatpush1.msra.mxu0 0.0
    %578 = vmatprep.subr.mxu0 0.0
    %579 = vmatpush1.msra.mxu0 0.0
    %580 = vmatprep.mubr.f32.mxu0 0.0
    %581 = vmatmul.mubr.f32.gmra.mrb[0].mxu0 %v469
    %v582 = vpop.f32.mrb[0].mxu0
    %v583 = vadd.f32 0.0, %v582
    %v584 = vpop.f32.mrb[0].mxu0
    %585 = vmatprep.mubr.f32.mxu0 0.0
    %586 = vmatmul.mubr.f32.gmra.mrb[0].mxu0 %v472
    %v587 = vpop.f32.mrb[0].mxu0
    %v588 = vadd.f32 0.0, %v587
    %v589 = vpop.f32.mrb[0].mxu0
    %590 = vmatprep.mubr.f32.mxu0 0.0
    %591 = vmatmul.mubr.f32.gmra.mrb[0].mxu0 %v475
    %v592 = vpop.f32.mrb[0].mxu0
    %v593 = vadd.f32 0.0, %v592
    %v594 = vpop.f32.mrb[0].mxu0
    %595 = vmatprep.mubr.f32.mxu0 0.0
    %596 = vmatmul.mubr.f32.gmra.mrb[0].mxu0 %v478
    %v597 = vpop.f32.mrb[0].mxu0
    %v598 = vadd.f32 0.0, %v597
    %v599 = vpop.f32.mrb[0].mxu0
    %600 = vmatprep.mubr.f32.mxu0 0.0
    %601 = vmatmul.mubr.f32.gmra.mrb[0].mxu0 %v481
    %v602 = vpop.f32.mrb[0].mxu0
    %v603 = vadd.f32 0.0, %v602
    %v604 = vpop.f32.mrb[0].mxu0
    %605 = vmatprep.mubr.f32.mxu0 0.0
    %606 = vmatmul.mubr.f32.gmra.mrb[0].mxu0 %v484
    %v607 = vpop.f32.mrb[0].mxu0
    %v608 = vadd.f32 0.0, %v607
    %v609 = vpop.f32.mrb[0].mxu0
    %610 = vmatprep.mubr.f32.mxu0 0.0
    %611 = vmatmul.mubr.f32.gmra.mrb[0].mxu0 %v487
    %v612 = vpop.f32.mrb[0].mxu0
    %v613 = vadd.f32 0.0, %v612
    %v614 = vpop.f32.mrb[0].mxu0
    %615 = vmatprep.mubr.f32.mxu0 0.0
    %616 = vmatmul.mubr.f32.gmra.mrb[0].mxu0 %v490
    %v617 = vpop.f32.mrb[0].mxu0
    %v618 = vadd.f32 0.0, %v617
    %v619 = vpop.f32.mrb[0].mxu0
    %620 = vmatprep.mubr.f32.mxu0 0.0
    %621 = vmatmul.mubr.f32.gmra.mrb[0].mxu0 %v493
    %v622 = vpop.f32.mrb[0].mxu0
    %v623 = vadd.f32 0.0, %v622
    %v624 = vpop.f32.mrb[0].mxu0
    %625 = vmatprep.mubr.f32.mxu0 0.0
    %626 = vmatmul.mubr.f32.gmra.mrb[0].mxu0 %v496
    %v627 = vpop.f32.mrb[0].mxu0
    %v628 = vadd.f32 0.0, %v627
    %v629 = vpop.f32.mrb[0].mxu0
    %630 = vmatprep.mubr.f32.mxu0 0.0
    %631 = vmatmul.mubr.f32.gmra.mrb[0].mxu0 %v499
    %v632 = vpop.f32.mrb[0].mxu0
    %v633 = vadd.f32 0.0, %v632
    %v634 = vpop.f32.mrb[0].mxu0
    %635 = vmatprep.mubr.f32.mxu0 0.0
    %636 = vmatmul.mubr.f32.gmra.mrb[0].mxu0 %v502
    %v637 = vpop.f32.mrb[0].mxu0
    %v638 = vadd.f32 0.0, %v637
    %v639 = vpop.f32.mrb[0].mxu0
    %640 = vmatprep.mubr.f32.mxu0 0.0
    %641 = vmatmul.mubr.f32.gmra.mrb[0].mxu0 %v505
    %v642 = vpop.f32.mrb[0].mxu0
    %v643 = vadd.f32 0.0, %v642
    %v644 = vpop.f32.mrb[0].mxu0
    %645 = vmatprep.mubr.f32.mxu0 0.0
    %646 = vmatmul.mubr.f32.gmra.mrb[0].mxu0 %v508
    %v647 = vpop.f32.mrb[0].mxu0
    %v648 = vadd.f32 0.0, %v647
    %v649 = vpop.f32.mrb[0].mxu0
    %650 = vmatprep.mubr.f32.mxu0 0.0
    %651 = vmatmul.mubr.f32.gmra.mrb[0].mxu0 %v511
    %v652 = vpop.f32.mrb[0].mxu0
    %v653 = vadd.f32 0.0, %v652
    %v654 = vpop.f32.mrb[0].mxu0
    %655 = vmatprep.mubr.f32.mxu0 0.0
    %656 = vmatmul.mubr.f32.gmra.mrb[0].mxu0 %v514
    %v657 = vpop.f32.mrb[0].mxu0
    %v658 = vadd.f32 0.0, %v657
    %v659 = vpop.f32.mrb[0].mxu0
    %660 = vdwg.mxu0
    %v662 = vsel %vm95, %v62, 0
    %v665 = vsel %vm95, %v63, 0
    %v668 = vsel %vm95, %v64, 0
    %v671 = vsel %vm95, %v65, 0
    %v674 = vsel %vm95, %v66, 0
    %v677 = vsel %vm95, %v67, 0
    %v680 = vsel %vm95, %v68, 0
    %v683 = vsel %vm95, %v69, 0
    %v686 = vsel %vm95, %v70, 0
    %v689 = vsel %vm95, %v71, 0
    %v692 = vsel %vm95, %v72, 0
    %v695 = vsel %vm95, %v73, 0
    %v698 = vsel %vm95, %v74, 0
    %v701 = vsel %vm95, %v75, 0
    %v704 = vsel %vm95, %v76, 0
    %v707 = vsel %vm95, %v77, 0
    %709 = vmatprep.subr.mxu0 0.0
    %710 = vmatpush1.msra.mxu0 %v464
    %711 = vmatprep.subr.mxu0 0.0
    %712 = vmatpush1.msra.mxu0 %v465
    %713 = vmatprep.subr.mxu0 0.0
    %714 = vmatpush1.msra.mxu0 0.0
    %715 = vmatprep.subr.mxu0 0.0
    %716 = vmatpush1.msra.mxu0 0.0
    %717 = vmatprep.subr.mxu0 0.0
    %718 = vmatpush1.msra.mxu0 0.0
    %719 = vmatprep.subr.mxu0 0.0
    %720 = vmatpush1.msra.mxu0 0.0
    %721 = vmatprep.subr.mxu0 0.0
    %722 = vmatpush1.msra.mxu0 0.0
    %723 = vmatprep.subr.mxu0 0.0
    %724 = vmatpush1.msra.mxu0 0.0
    %725 = vmatprep.subr.mxu0 0.0
    %726 = vmatpush1.msra.mxu0 0.0
    %727 = vmatprep.subr.mxu0 0.0
    %728 = vmatpush1.msra.mxu0 0.0
    %729 = vmatprep.subr.mxu0 0.0
    %730 = vmatpush1.msra.mxu0 0.0
    %731 = vmatprep.subr.mxu0 0.0
    %732 = vmatpush1.msra.mxu0 0.0
    %733 = vmatprep.subr.mxu0 0.0
    %734 = vmatpush1.msra.mxu0 0.0
    %735 = vmatprep.subr.mxu0 0.0
    %736 = vmatpush1.msra.mxu0 0.0
    %737 = vmatprep.subr.mxu0 0.0
    %738 = vmatpush1.msra.mxu0 0.0
    %739 = vmatprep.subr.mxu0 0.0
    %740 = vmatpush1.msra.mxu0 0.0
    %741 = vmatprep.subr.mxu0 0.0
    %742 = vmatpush1.msra.mxu0 0.0
    %743 = vmatprep.subr.mxu0 0.0
    %744 = vmatpush1.msra.mxu0 0.0
    %745 = vmatprep.subr.mxu0 0.0
    %746 = vmatpush1.msra.mxu0 0.0
    %747 = vmatprep.subr.mxu0 0.0
    %748 = vmatpush1.msra.mxu0 0.0
    %749 = vmatprep.subr.mxu0 0.0
    %750 = vmatpush1.msra.mxu0 0.0
    %751 = vmatprep.subr.mxu0 0.0
    %752 = vmatpush1.msra.mxu0 0.0
    %753 = vmatprep.subr.mxu0 0.0
    %754 = vmatpush1.msra.mxu0 0.0
    %755 = vmatprep.subr.mxu0 0.0
    %756 = vmatpush1.msra.mxu0 0.0
    %757 = vmatprep.subr.mxu0 0.0
    %758 = vmatpush1.msra.mxu0 0.0
    %759 = vmatprep.subr.mxu0 0.0
    %760 = vmatpush1.msra.mxu0 0.0
    %761 = vmatprep.subr.mxu0 0.0
    %762 = vmatpush1.msra.mxu0 0.0
    %763 = vmatprep.subr.mxu0 0.0
    %764 = vmatpush1.msra.mxu0 0.0
    %765 = vmatprep.subr.mxu0 0.0
    %766 = vmatpush1.msra.mxu0 0.0
    %767 = vmatprep.subr.mxu0 0.0
    %768 = vmatpush1.msra.mxu0 0.0
    %769 = vmatprep.subr.mxu0 0.0
    %770 = vmatpush1.msra.mxu0 0.0
    %771 = vmatprep.subr.mxu0 0.0
    %772 = vmatpush1.msra.mxu0 0.0
    %773 = vmatprep.mubr.f32.mxu0 0.0
    %774 = vmatmul.mubr.f32.gmra.mrb[0].mxu0 %v662
    %v775 = vpop.f32.mrb[0].mxu0
    %v776 = vadd.f32 %v583, %v775
    %v777 = vpop.f32.mrb[0].mxu0
    %778 = vmatprep.mubr.f32.mxu0 0.0
    %779 = vmatmul.mubr.f32.gmra.mrb[0].mxu0 %v665
    %v780 = vpop.f32.mrb[0].mxu0
    %v781 = vadd.f32 %v588, %v780
    %v782 = vpop.f32.mrb[0].mxu0
    %783 = vmatprep.mubr.f32.mxu0 0.0
    %784 = vmatmul.mubr.f32.gmra.mrb[0].mxu0 %v668
    %v785 = vpop.f32.mrb[0].mxu0
    %v786 = vadd.f32 %v593, %v785
    %v787 = vpop.f32.mrb[0].mxu0
    %788 = vmatprep.mubr.f32.mxu0 0.0
    %789 = vmatmul.mubr.f32.gmra.mrb[0].mxu0 %v671
    %v790 = vpop.f32.mrb[0].mxu0
    %v791 = vadd.f32 %v598, %v790
    %v792 = vpop.f32.mrb[0].mxu0
    %793 = vmatprep.mubr.f32.mxu0 0.0
    %794 = vmatmul.mubr.f32.gmra.mrb[0].mxu0 %v674
    %v795 = vpop.f32.mrb[0].mxu0
    %v796 = vadd.f32 %v603, %v795
    %v797 = vpop.f32.mrb[0].mxu0
    %798 = vmatprep.mubr.f32.mxu0 0.0
    %799 = vmatmul.mubr.f32.gmra.mrb[0].mxu0 %v677
    %v800 = vpop.f32.mrb[0].mxu0
    %v801 = vadd.f32 %v608, %v800
    %v802 = vpop.f32.mrb[0].mxu0
    %803 = vmatprep.mubr.f32.mxu0 0.0
    %804 = vmatmul.mubr.f32.gmra.mrb[0].mxu0 %v680
    %v805 = vpop.f32.mrb[0].mxu0
    %v806 = vadd.f32 %v613, %v805
    %v807 = vpop.f32.mrb[0].mxu0
    %808 = vmatprep.mubr.f32.mxu0 0.0
    %809 = vmatmul.mubr.f32.gmra.mrb[0].mxu0 %v683
    %v810 = vpop.f32.mrb[0].mxu0
    %v811 = vadd.f32 %v618, %v810
    %v812 = vpop.f32.mrb[0].mxu0
    %813 = vmatprep.mubr.f32.mxu0 0.0
    %814 = vmatmul.mubr.f32.gmra.mrb[0].mxu0 %v686
    %v815 = vpop.f32.mrb[0].mxu0
    %v816 = vadd.f32 %v623, %v815
    %v817 = vpop.f32.mrb[0].mxu0
    %818 = vmatprep.mubr.f32.mxu0 0.0
    %819 = vmatmul.mubr.f32.gmra.mrb[0].mxu0 %v689
    %v820 = vpop.f32.mrb[0].mxu0
    %v821 = vadd.f32 %v628, %v820
    %v822 = vpop.f32.mrb[0].mxu0
    %823 = vmatprep.mubr.f32.mxu0 0.0
    %824 = vmatmul.mubr.f32.gmra.mrb[0].mxu0 %v692
    %v825 = vpop.f32.mrb[0].mxu0
    %v826 = vadd.f32 %v633, %v825
    %v827 = vpop.f32.mrb[0].mxu0
    %828 = vmatprep.mubr.f32.mxu0 0.0
    %829 = vmatmul.mubr.f32.gmra.mrb[0].mxu0 %v695
    %v830 = vpop.f32.mrb[0].mxu0
    %v831 = vadd.f32 %v638, %v830
    %v832 = vpop.f32.mrb[0].mxu0
    %833 = vmatprep.mubr.f32.mxu0 0.0
    %834 = vmatmul.mubr.f32.gmra.mrb[0].mxu0 %v698
    %v835 = vpop.f32.mrb[0].mxu0
    %v836 = vadd.f32 %v643, %v835
    %v837 = vpop.f32.mrb[0].mxu0
    %838 = vmatprep.mubr.f32.mxu0 0.0
    %839 = vmatmul.mubr.f32.gmra.mrb[0].mxu0 %v701
    %v840 = vpop.f32.mrb[0].mxu0
    %v841 = vadd.f32 %v648, %v840
    %v842 = vpop.f32.mrb[0].mxu0
    %843 = vmatprep.mubr.f32.mxu0 0.0
    %844 = vmatmul.mubr.f32.gmra.mrb[0].mxu0 %v704
    %v845 = vpop.f32.mrb[0].mxu0
    %v846 = vadd.f32 %v653, %v845
    %v847 = vpop.f32.mrb[0].mxu0
    %848 = vmatprep.mubr.f32.mxu0 0.0
    %849 = vmatmul.mubr.f32.gmra.mrb[0].mxu0 %v707
    %v850 = vpop.f32.mrb[0].mxu0
    %v851 = vadd.f32 %v658, %v850
    %v852 = vpop.f32.mrb[0].mxu0
    %853 = vdwg.mxu0
    %v854 = vld [vmem:[%s3] sm:$0x1]
    %v856 = vlaneseq
    %v857 = vshrl.u32 %v856, 7
    %v858 = vsub.s32 0, %v857
    %v859 = vrot.slane %v854, %v858
    %v861 = vmul.f32 %v352, %v859
    %v862 = vmul.f32 %v353, %v859
    %v863 = vmul.f32 %v354, %v859
    %v864 = vmul.f32 %v355, %v859
    %v865 = vmul.f32 %v356, %v859
    %v866 = vmul.f32 %v357, %v859
    %v867 = vmul.f32 %v358, %v859
    %v868 = vmul.f32 %v359, %v859
    %v869 = vmul.f32 %v360, %v859
    %v870 = vmul.f32 %v361, %v859
    %v871 = vmul.f32 %v362, %v859
    %v872 = vmul.f32 %v363, %v859
    %v873 = vmul.f32 %v364, %v859
    %v874 = vmul.f32 %v365, %v859
    %v875 = vmul.f32 %v366, %v859
    %v876 = vmul.f32 %v367, %v859
    %v877 = vsub.f32 %v776, %v861
    %v878 = vsub.f32 %v781, %v862
    %v879 = vsub.f32 %v786, %v863
    %v880 = vsub.f32 %v791, %v864
    %v881 = vsub.f32 %v796, %v865
    %v882 = vsub.f32 %v801, %v866
    %v883 = vsub.f32 %v806, %v867
    %v884 = vsub.f32 %v811, %v868
    %v885 = vsub.f32 %v816, %v869
    %v886 = vsub.f32 %v821, %v870
    %v887 = vsub.f32 %v826, %v871
    %v888 = vsub.f32 %v831, %v872
    %v889 = vsub.f32 %v836, %v873
    %v890 = vsub.f32 %v841, %v874
    %v891 = vsub.f32 %v846, %v875
    %v892 = vsub.f32 %v851, %v876
    %v893 = vmul.f32 %v448, %v877
    %v894 = vmul.f32 %v449, %v878
    %v895 = vmul.f32 %v450, %v879
    %v896 = vmul.f32 %v451, %v880
    %v897 = vmul.f32 %v452, %v881
    %v898 = vmul.f32 %v453, %v882
    %v899 = vmul.f32 %v454, %v883
    %v900 = vmul.f32 %v455, %v884
    %v901 = vmul.f32 %v456, %v885
    %v902 = vmul.f32 %v457, %v886
    %v903 = vmul.f32 %v458, %v887
    %v904 = vmul.f32 %v459, %v888
    %v905 = vmul.f32 %v460, %v889
    %v906 = vmul.f32 %v461, %v890
    %v907 = vmul.f32 %v462, %v891
    %v908 = vmul.f32 %v463, %v892
    %v909 = vld [vmem:[%s4] sm:$0x1]
    %v911 = vlaneseq
    %v912 = vshrl.u32 %v911, 7
    %v913 = vsub.s32 0, %v912
    %v914 = vrot.slane %v909, %v913
    %v916 = vadd.f32 %v893, %v914
    %v917 = vadd.f32 %v894, %v914
    %v918 = vadd.f32 %v895, %v914
    %v919 = vadd.f32 %v896, %v914
    %v920 = vadd.f32 %v897, %v914
    %v921 = vadd.f32 %v898, %v914
    %v922 = vadd.f32 %v899, %v914
    %v923 = vadd.f32 %v900, %v914
    %v924 = vadd.f32 %v901, %v914
    %v925 = vadd.f32 %v902, %v914
    %v926 = vadd.f32 %v903, %v914
    %v927 = vadd.f32 %v904, %v914
    %v928 = vadd.f32 %v905, %v914
    %v929 = vadd.f32 %v906, %v914
    %v930 = vadd.f32 %v907, %v914
    %v931 = vadd.f32 %v908, %v914
    %932 = vst.msk [vmem:[#allocation8] sm:$0xff] %vm95, %v916
    %933 = vst.msk [vmem:[#allocation8 + $0x8] sm:$0xff] %vm95, %v917
    %934 = vst.msk [vmem:[#allocation8 + $0x10] sm:$0xff] %vm95, %v918
    %935 = vst.msk [vmem:[#allocation8 + $0x18] sm:$0xff] %vm95, %v919
    %936 = vst.msk [vmem:[#allocation8 + $0x20] sm:$0xff] %vm95, %v920
    %937 = vst.msk [vmem:[#allocation8 + $0x28] sm:$0xff] %vm95, %v921
    %938 = vst.msk [vmem:[#allocation8 + $0x30] sm:$0xff] %vm95, %v922
    %939 = vst.msk [vmem:[#allocation8 + $0x38] sm:$0xff] %vm95, %v923
    %940 = vst.msk [vmem:[#allocation8 + $0x40] sm:$0xff] %vm95, %v924
    %941 = vst.msk [vmem:[#allocation8 + $0x48] sm:$0xff] %vm95, %v925
    %942 = vst.msk [vmem:[#allocation8 + $0x50] sm:$0xff] %vm95, %v926
    %943 = vst.msk [vmem:[#allocation8 + $0x58] sm:$0xff] %vm95, %v927
    %944 = vst.msk [vmem:[#allocation8 + $0x60] sm:$0xff] %vm95, %v928
    %945 = vst.msk [vmem:[#allocation8 + $0x68] sm:$0xff] %vm95, %v929
    %946 = vst.msk [vmem:[#allocation8 + $0x70] sm:$0xff] %vm95, %v930
    %947 = vst.msk [vmem:[#allocation8 + $0x78] sm:$0xff] %vm95, %v931
    // Predicated region
    $region34: #{tpu_custom_call.1} parent=1 // pred_check
      _
    $region35: #{tpu_custom_call.1} parent=1 // pred_check_branch
      %949 = sbr.rel (0) target = $region37
    $region36: #{tpu_custom_call.1} parent=1 // pred_region
      %s951 = ssub.s32 2048, 2048
      %952 = vsyncadd [#allocation4], %s951
      %s953 = sshll.u32 [#allocation8], 4
      %s954 = int_to_ptr.vmem [resolvable:$true] %s953
      %959 = dma.vmem_to_hbm [thread:$0]  %s954, 2048, %s5, [#allocation4], 128, 128, 8
    $region37: #{tpu_custom_call.1} parent=1 // pred_fallthru
      _
    // Predicated region
    $region38: #{tpu_custom_call.1} parent=1 // pred_check
      _
    $region39: #{tpu_custom_call.1} parent=1 // pred_check_branch
      %961 = sbr.rel (0) target = $region41
    $region40: #{tpu_custom_call.1} parent=1 // pred_region
      %962 = dma.done [#allocation4], 2048
    $region41: #{tpu_custom_call.1} parent=1 // pred_fallthru
      _
    %963 = vsyncpa [#allocation3], 1
    %964 = vsyncpa [#allocation6], 1
    %965 = vsyncpa [#allocation4], 1

</llo_original>
